<compile_context>
chip_gen: v5e
topology: v5e:2x2
jax: 0.10.0
libtpu: 0.0.40
codegen_flags: <defaults>
</compile_context>

<pallas_src>
import jax
import jax.numpy as jnp
from jax.experimental import pallas as pl
from jax.experimental.pallas import tpu as pltpu

# ----------------------------- hyper-parameters -----------------------------
EXERCISE_NUM = 10
SKILL_NUM = 10
STU_NUM = 5
ANS_TIME_NUM = 20
INTERVAL_TIME_NUM = 30
D_K = 32
D_A = 32
D_E = 32
GAMMA = 0.03

BATCH = 2
SEQ = 8


# ------------------------------- fused kernel --------------------------------
def _lpkt_fused_kernel(
    eid_ref, atid_ref, itid_ref, ans_ref, eid0_ref,          # per-call indices
    ex_tab_ref, at_tab_ref, it_tab_ref,                       # embedding tables
    w_le_e_ref, w_le_t_ref, w_le_a_ref, b_le_ref,             # learning_embed_layer (split)
    w_it_ref, w_lrn_ref, w_h_ref, b_ll_ref,                   # learning_layer (split, zero block dropped)
    q_ref, h0_ref,                                            # q_matrix, h init
    o_ref,                                                    # (N, d_k) gains
):
    f32 = jnp.float32
    N, dk = o_ref.shape
    B = eid0_ref.shape[0]
    Sm1 = N // B
    E = ex_tab_ref.shape[0]
    AT = at_tab_ref.shape[0]
    IT = it_tab_ref.shape[0]

    # ---- embedding "gathers" as one-hot matmuls against VMEM-resident tables
    oh_e = (eid_ref[...] == jax.lax.broadcasted_iota(jnp.int32, (N, E), 1)).astype(f32)
    oh_at = (atid_ref[...] == jax.lax.broadcasted_iota(jnp.int32, (N, AT), 1)).astype(f32)
    oh_it = (itid_ref[...] == jax.lax.broadcasted_iota(jnp.int32, (N, IT), 1)).astype(f32)

    exercise = jnp.dot(oh_e, ex_tab_ref[...], preferred_element_type=f32)    # (N, d_e)
    ans_time = jnp.dot(oh_at, at_tab_ref[...], preferred_element_type=f32)   # (N, d_k)
    inter_t = jnp.dot(oh_it, it_tab_ref[...], preferred_element_type=f32)    # (N, d_k)

    # ---- learning = learning_embed_layer(cat(exercise, ans_time, answer))
    # without the concat: split matmuls; the 0/1 answer replicated across the
    # d_a lanes collapses to answer * colsum(W_answer_block) (one VPU FMA).
    ans = ans_ref[...].astype(f32)                                           # (N, 1)
    learning = (
        jnp.dot(exercise, w_le_e_ref[...], preferred_element_type=f32)
        + jnp.dot(ans_time, w_le_t_ref[...], preferred_element_type=f32)
        + ans * w_le_a_ref[...]
        + b_le_ref[...]
    )                                                                         # (N, d_k)

    # ---- h_pre = q_matrix[eid0] * h[0, eid0, :]  (set once, step-invariant)
    oh_e0 = (eid0_ref[...] == jax.lax.broadcasted_iota(jnp.int32, (B, E), 1)).astype(f32)
    h_pre = (
        jnp.dot(oh_e0, q_ref[...], preferred_element_type=f32)
        * jnp.dot(oh_e0, h0_ref[...], preferred_element_type=f32)
    )                                                                         # (B, d_k)
    h_term = jnp.dot(h_pre, w_h_ref[...], preferred_element_type=f32) + b_ll_ref[...]  # (B, d_k)

    # Broadcast the per-batch-row h_term over the S-1 steps via a tiny (N, B)
    # selection matmul (row n belongs to batch n // Sm1) -- no in-kernel
    # reshape/broadcast relayouts, no integer division.
    row = jax.lax.broadcasted_iota(jnp.int32, (N, B), 0)
    bat = jax.lax.broadcasted_iota(jnp.int32, (N, B), 1)
    sel = jnp.logical_and(row >= bat * Sm1, row < (bat + 1) * Sm1).astype(f32)
    h_rows = jnp.dot(sel, h_term, preferred_element_type=f32)                 # (N, d_k)

    # ---- learning_layer(cat(learning_pre, it_t, learning_t, h_pre)):
    # learning_pre is all zeros in the reference loop, so its weight block is
    # dropped entirely.
    o_ref[...] = (
        jnp.dot(inter_t, w_it_ref[...], preferred_element_type=f32)
        + jnp.dot(learning, w_lrn_ref[...], preferred_element_type=f32)
        + h_rows
    )


def _full_spec(shape):
    nd = len(shape)
    return pl.BlockSpec(shape, lambda i, _nd=nd: (0,) * _nd)


def lpkt_fused_pallas(eid_rows, atid_rows, itid_rows, ans_rows, eid0, params):
    args = (
        eid_rows, atid_rows, itid_rows, ans_rows, eid0,
        params["exercise_embed"], params["ans_time_embed"], params["interval_time_embed"],
        params["w_le_e"], params["w_le_t"], params["w_le_a"], params["b_le"],
        params["w_ll_it"], params["w_ll_lrn"], params["w_ll_h"], params["b_ll"],
        params["q_matrix"], params["h_init"],
    )
    n = eid_rows.shape[0]
    return pl.pallas_call(
        _lpkt_fused_kernel,
        out_shape=jax.ShapeDtypeStruct((n, D_K), jnp.float32),
        grid=(1,),
        in_specs=[_full_spec(a.shape) for a in args],
        out_specs=_full_spec((n, D_K)),
        compiler_params=pltpu.CompilerParams(dimension_semantics=("arbitrary",)),
    )(*args)


# ------------------------------ parameter init -------------------------------
def _xavier_normal(key, shape_out_in):
    fan_out, fan_in = shape_out_in
    std = (2.0 / (fan_in + fan_out)) ** 0.5
    return std * jax.random.normal(key, shape_out_in, dtype=jnp.float32)


def _xavier_uniform(key, shape):
    fan_out, fan_in = shape  # torch 2-D convention: fan_in = size(1)
    bound = (6.0 / (fan_in + fan_out)) ** 0.5
    return jax.random.uniform(key, shape, jnp.float32, -bound, bound)


def init_params(key):
    ks = jax.random.split(key, 7)
    # Embeddings (torch nn.Embedding default init: N(0, 1)).
    exercise_embed = jax.random.normal(ks[0], (EXERCISE_NUM, D_E), jnp.float32)
    ans_time_embed = jax.random.normal(ks[1], (ANS_TIME_NUM, D_K), jnp.float32)
    interval_time_embed = jax.random.normal(ks[2], (INTERVAL_TIME_NUM, D_K), jnp.float32)
    # Linear layers; stored transposed ([in, out]) so the kernel does x @ W.
    w_le = _xavier_normal(ks[3], (D_K, D_E + D_K + D_A)).T     # learning_embed_layer
    w_ll = _xavier_normal(ks[4], (D_K, D_K * 4)).T             # learning_layer
    # q_matrix: 0/1 pattern, zeros replaced by gamma (as in __init__).
    q_raw = (jax.random.uniform(ks[5], (EXERCISE_NUM, D_K)) > 0.5).astype(jnp.float32)
    q_matrix = jnp.where(q_raw == 0.0, GAMMA, q_raw)
    # h = xavier_uniform(zeros(exercise_num, d_k)), repeated over batch.
    h_init = _xavier_uniform(ks[6], (EXERCISE_NUM, D_K))
    return dict(
        exercise_embed=exercise_embed,
        ans_time_embed=ans_time_embed,
        interval_time_embed=interval_time_embed,
        # learning_embed_layer split: exercise block, ans-time block, and the
        # answer block collapsed to its column sum (answer is 0/1 replicated
        # across all d_a lanes, so that block's matmul == answer * colsum).
        w_le_e=w_le[:D_E],
        w_le_t=w_le[D_E:D_E + D_K],
        w_le_a=jnp.sum(w_le[D_E + D_K:], axis=0, keepdims=True),   # (1, d_k)
        b_le=jnp.zeros((1, D_K), jnp.float32),
        # learning_layer split; rows [0:d_k] multiply the all-zeros
        # learning_pre in the reference loop and are dropped.
        w_ll_it=w_ll[D_K:2 * D_K],
        w_ll_lrn=w_ll[2 * D_K:3 * D_K],
        w_ll_h=w_ll[3 * D_K:],
        b_ll=jnp.zeros((1, D_K), jnp.float32),
        q_matrix=q_matrix,
        h_init=h_init,
    )


# --------------------------------- forward -----------------------------------
@jax.jit
def lpkt_forward(params, exercise_id, skill_id, stu_id, answer_value,
                 ans_time, interval_time):
    del skill_id, stu_id  # present in the signature, unused by the reference forward
    B, S = exercise_id.shape
    sm1 = S - 1
    n = B * sm1

    # Index preprocessing (tiny plain-JAX int glue; everything heavy is fused
    # into the single pallas_call below).
    # 'Supposing the units of the answer time and the interval time are both Second (s)'
    itid = interval_time // 60       # TODO(synk): torch in-place /= on an int tensor
    atid = ans_time // 1             # identity for ints
    # TODO(synk): out-of-range indices yield an all-zero one-hot row (torch
    # nn.Embedding would raise); test data is always in range.

    # Only steps 0..S-2 feed the reference per-step loop: slice before the
    # kernel so no dead row is DMA'd or computed, and flatten to a lane-major
    # (B*(S-1), 1) row layout for the fused kernel.
    eid_rows = exercise_id[:, :sm1].reshape(n, 1)
    atid_rows = atid[:, :sm1].reshape(n, 1)
    itid_rows = itid.reshape(n, 1)
    ans_rows = answer_value[:, :sm1].reshape(n, 1)
    eid0 = exercise_id[:, 0:1]       # (B, 1) -- h_pre is set once from step 0

    gains = lpkt_fused_pallas(eid_rows, atid_rows, itid_rows, ans_rows, eid0, params)
    return gains.reshape(B, sm1, D_K)


# ----------------------------------- main -------------------------------------
if __name__ == "__main__":
    key = jax.random.PRNGKey(0)
    k_param, k_eid, k_sid, k_stu, k_ans, k_at, k_it = jax.random.split(key, 7)

    params = init_params(k_param)

    exercise_id = jax.random.randint(k_eid, (BATCH, SEQ), 0, EXERCISE_NUM, jnp.int32)
    skill_id = jax.random.randint(k_sid, (BATCH, SEQ), 0, SKILL_NUM, jnp.int32)
    stu_id = jax.random.randint(k_stu, (BATCH,), 0, STU_NUM, jnp.int32)
    answer_value = jax.random.randint(k_ans, (BATCH, SEQ), 0, 2, jnp.int32)
    ans_time = jax.random.randint(k_at, (BATCH, SEQ), 0, ANS_TIME_NUM, jnp.int32)
    # interval times in seconds; //60 maps them into the embedding index range
    interval_time = jax.random.randint(
        k_it, (BATCH, SEQ - 1), 0, INTERVAL_TIME_NUM * 60, jnp.int32
    )

    out = lpkt_forward(
        params, exercise_id, skill_id, stu_id, answer_value, ans_time, interval_time
    )
    out = jax.block_until_ready(out)
    assert out.shape == (BATCH, SEQ - 1, D_K)
    assert bool(jnp.all(jnp.isfinite(out)))
    print("KERNEL_OK")
</pallas_src>

<mosaic_0001>
module attributes {stable_mosaic.version = 11 : i64} {
  func.func @_lpkt_fused_kernel(%arg0: i32, %arg1: memref<14x1xi32, #tpu.memory_space<vmem>>, %arg2: memref<14x1xi32, #tpu.memory_space<vmem>>, %arg3: memref<14x1xi32, #tpu.memory_space<vmem>>, %arg4: memref<14x1xi32, #tpu.memory_space<vmem>>, %arg5: memref<2x1xi32, #tpu.memory_space<vmem>>, %arg6: memref<10x32xf32, #tpu.memory_space<vmem>>, %arg7: memref<20x32xf32, #tpu.memory_space<vmem>>, %arg8: memref<30x32xf32, #tpu.memory_space<vmem>>, %arg9: memref<32x32xf32, #tpu.memory_space<vmem>>, %arg10: memref<32x32xf32, #tpu.memory_space<vmem>>, %arg11: memref<1x32xf32, #tpu.memory_space<vmem>>, %arg12: memref<1x32xf32, #tpu.memory_space<vmem>>, %arg13: memref<32x32xf32, #tpu.memory_space<vmem>>, %arg14: memref<32x32xf32, #tpu.memory_space<vmem>>, %arg15: memref<32x32xf32, #tpu.memory_space<vmem>>, %arg16: memref<1x32xf32, #tpu.memory_space<vmem>>, %arg17: memref<10x32xf32, #tpu.memory_space<vmem>>, %arg18: memref<10x32xf32, #tpu.memory_space<vmem>>, %arg19: memref<14x32xf32, #tpu.memory_space<vmem>>) attributes {dimension_semantics = [#tpu.dimension_semantics<arbitrary>], iteration_bounds = array<i64: 1>, scalar_prefetch = 0 : i64, scratch_operands = 0 : i64, tpu.core_type = #tpu.core_type<tc>, window_params = [{pipeline_mode = #tpu.pipeline_mode<synchronous>, transform_indices = @transform_0, window_bounds = array<i64: 14, 1>}, {pipeline_mode = #tpu.pipeline_mode<synchronous>, transform_indices = @transform_1, window_bounds = array<i64: 14, 1>}, {pipeline_mode = #tpu.pipeline_mode<synchronous>, transform_indices = @transform_2, window_bounds = array<i64: 14, 1>}, {pipeline_mode = #tpu.pipeline_mode<synchronous>, transform_indices = @transform_3, window_bounds = array<i64: 14, 1>}, {pipeline_mode = #tpu.pipeline_mode<synchronous>, transform_indices = @transform_4, window_bounds = array<i64: 2, 1>}, {pipeline_mode = #tpu.pipeline_mode<synchronous>, transform_indices = @transform_5, window_bounds = array<i64: 10, 32>}, {pipeline_mode = #tpu.pipeline_mode<synchronous>, transform_indices = @transform_6, window_bounds = array<i64: 20, 32>}, {pipeline_mode = #tpu.pipeline_mode<synchronous>, transform_indices = @transform_7, window_bounds = array<i64: 30, 32>}, {pipeline_mode = #tpu.pipeline_mode<synchronous>, transform_indices = @transform_8, window_bounds = array<i64: 32, 32>}, {pipeline_mode = #tpu.pipeline_mode<synchronous>, transform_indices = @transform_9, window_bounds = array<i64: 32, 32>}, {pipeline_mode = #tpu.pipeline_mode<synchronous>, transform_indices = @transform_10, window_bounds = array<i64: 1, 32>}, {pipeline_mode = #tpu.pipeline_mode<synchronous>, transform_indices = @transform_11, window_bounds = array<i64: 1, 32>}, {pipeline_mode = #tpu.pipeline_mode<synchronous>, transform_indices = @transform_12, window_bounds = array<i64: 32, 32>}, {pipeline_mode = #tpu.pipeline_mode<synchronous>, transform_indices = @transform_13, window_bounds = array<i64: 32, 32>}, {pipeline_mode = #tpu.pipeline_mode<synchronous>, transform_indices = @transform_14, window_bounds = array<i64: 32, 32>}, {pipeline_mode = #tpu.pipeline_mode<synchronous>, transform_indices = @transform_15, window_bounds = array<i64: 1, 32>}, {pipeline_mode = #tpu.pipeline_mode<synchronous>, transform_indices = @transform_16, window_bounds = array<i64: 10, 32>}, {pipeline_mode = #tpu.pipeline_mode<synchronous>, transform_indices = @transform_17, window_bounds = array<i64: 10, 32>}, {pipeline_mode = #tpu.pipeline_mode<synchronous>, transform_indices = @transform_18, window_bounds = array<i64: 14, 32>}]} {
    %c0 = arith.constant 0 : index
    %c0_0 = arith.constant 0 : index
    %0 = vector.load %arg1[%c0, %c0_0] : memref<14x1xi32, #tpu.memory_space<vmem>>, vector<14x1xi32>
    %1 = tpu.iota {dimensions = array<i32: 1>} : vector<14x10xi32>
    %2 = vector.broadcast %0 : vector<14x1xi32> to vector<14x10xi32>
    %3 = arith.cmpi eq, %2, %1 : vector<14x10xi32>
    %4 = arith.extui %3 : vector<14x10xi1> to vector<14x10xi32>
    %5 = arith.sitofp %4 : vector<14x10xi32> to vector<14x10xf32>
    %c0_1 = arith.constant 0 : index
    %c0_2 = arith.constant 0 : index
    %6 = vector.load %arg2[%c0_1, %c0_2] : memref<14x1xi32, #tpu.memory_space<vmem>>, vector<14x1xi32>
    %7 = tpu.iota {dimensions = array<i32: 1>} : vector<14x20xi32>
    %8 = vector.broadcast %6 : vector<14x1xi32> to vector<14x20xi32>
    %9 = arith.cmpi eq, %8, %7 : vector<14x20xi32>
    %10 = arith.extui %9 : vector<14x20xi1> to vector<14x20xi32>
    %11 = arith.sitofp %10 : vector<14x20xi32> to vector<14x20xf32>
    %c0_3 = arith.constant 0 : index
    %c0_4 = arith.constant 0 : index
    %12 = vector.load %arg3[%c0_3, %c0_4] : memref<14x1xi32, #tpu.memory_space<vmem>>, vector<14x1xi32>
    %13 = tpu.iota {dimensions = array<i32: 1>} : vector<14x30xi32>
    %14 = vector.broadcast %12 : vector<14x1xi32> to vector<14x30xi32>
    %15 = arith.cmpi eq, %14, %13 : vector<14x30xi32>
    %16 = arith.extui %15 : vector<14x30xi1> to vector<14x30xi32>
    %17 = arith.sitofp %16 : vector<14x30xi32> to vector<14x30xf32>
    %c0_5 = arith.constant 0 : index
    %c0_6 = arith.constant 0 : index
    %18 = vector.load %arg6[%c0_5, %c0_6] : memref<10x32xf32, #tpu.memory_space<vmem>>, vector<10x32xf32>
    %cst = arith.constant dense<0.000000e+00> : vector<14x32xf32>
    %19 = tpu.matmul %5, %18, %cst {dimension_numbers = #tpu.dot_dimension_numbers<[1], [0], [0], [1], [0, 0, 1, 1], [], []>} : vector<14x10xf32>, vector<10x32xf32>, vector<14x32xf32> -> vector<14x32xf32>
    %c0_7 = arith.constant 0 : index
    %c0_8 = arith.constant 0 : index
    %20 = vector.load %arg7[%c0_7, %c0_8] : memref<20x32xf32, #tpu.memory_space<vmem>>, vector<20x32xf32>
    %cst_9 = arith.constant dense<0.000000e+00> : vector<14x32xf32>
    %21 = tpu.matmul %11, %20, %cst_9 {dimension_numbers = #tpu.dot_dimension_numbers<[1], [0], [0], [1], [0, 0, 1, 1], [], []>} : vector<14x20xf32>, vector<20x32xf32>, vector<14x32xf32> -> vector<14x32xf32>
    %c0_10 = arith.constant 0 : index
    %c0_11 = arith.constant 0 : index
    %22 = vector.load %arg8[%c0_10, %c0_11] : memref<30x32xf32, #tpu.memory_space<vmem>>, vector<30x32xf32>
    %cst_12 = arith.constant dense<0.000000e+00> : vector<14x32xf32>
    %23 = tpu.matmul %17, %22, %cst_12 {dimension_numbers = #tpu.dot_dimension_numbers<[1], [0], [0], [1], [0, 0, 1, 1], [], []>} : vector<14x30xf32>, vector<30x32xf32>, vector<14x32xf32> -> vector<14x32xf32>
    %c0_13 = arith.constant 0 : index
    %c0_14 = arith.constant 0 : index
    %24 = vector.load %arg4[%c0_13, %c0_14] : memref<14x1xi32, #tpu.memory_space<vmem>>, vector<14x1xi32>
    %25 = arith.sitofp %24 : vector<14x1xi32> to vector<14x1xf32>
    %c0_15 = arith.constant 0 : index
    %c0_16 = arith.constant 0 : index
    %26 = vector.load %arg9[%c0_15, %c0_16] : memref<32x32xf32, #tpu.memory_space<vmem>>, vector<32x32xf32>
    %cst_17 = arith.constant dense<0.000000e+00> : vector<14x32xf32>
    %27 = tpu.matmul %19, %26, %cst_17 {dimension_numbers = #tpu.dot_dimension_numbers<[1], [0], [0], [1], [0, 0, 1, 1], [], []>} : vector<14x32xf32>, vector<32x32xf32>, vector<14x32xf32> -> vector<14x32xf32>
    %c0_18 = arith.constant 0 : index
    %c0_19 = arith.constant 0 : index
    %28 = vector.load %arg10[%c0_18, %c0_19] : memref<32x32xf32, #tpu.memory_space<vmem>>, vector<32x32xf32>
    %cst_20 = arith.constant dense<0.000000e+00> : vector<14x32xf32>
    %29 = tpu.matmul %21, %28, %cst_20 {dimension_numbers = #tpu.dot_dimension_numbers<[1], [0], [0], [1], [0, 0, 1, 1], [], []>} : vector<14x32xf32>, vector<32x32xf32>, vector<14x32xf32> -> vector<14x32xf32>
    %30 = arith.addf %27, %29 : vector<14x32xf32>
    %c0_21 = arith.constant 0 : index
    %c0_22 = arith.constant 0 : index
    %31 = vector.load %arg11[%c0_21, %c0_22] : memref<1x32xf32, #tpu.memory_space<vmem>>, vector<1x32xf32>
    %32 = vector.broadcast %25 : vector<14x1xf32> to vector<14x32xf32>
    %33 = vector.broadcast %31 : vector<1x32xf32> to vector<14x32xf32>
    %34 = arith.mulf %32, %33 : vector<14x32xf32>
    %35 = arith.addf %30, %34 : vector<14x32xf32>
    %c0_23 = arith.constant 0 : index
    %c0_24 = arith.constant 0 : index
    %36 = vector.load %arg12[%c0_23, %c0_24] : memref<1x32xf32, #tpu.memory_space<vmem>>, vector<1x32xf32>
    %37 = vector.broadcast %36 : vector<1x32xf32> to vector<14x32xf32>
    %38 = arith.addf %35, %37 : vector<14x32xf32>
    %c0_25 = arith.constant 0 : index
    %c0_26 = arith.constant 0 : index
    %39 = vector.load %arg5[%c0_25, %c0_26] : memref<2x1xi32, #tpu.memory_space<vmem>>, vector<2x1xi32>
    %40 = tpu.iota {dimensions = array<i32: 1>} : vector<2x10xi32>
    %41 = vector.broadcast %39 : vector<2x1xi32> to vector<2x10xi32>
    %42 = arith.cmpi eq, %41, %40 : vector<2x10xi32>
    %43 = arith.extui %42 : vector<2x10xi1> to vector<2x10xi32>
    %44 = arith.sitofp %43 : vector<2x10xi32> to vector<2x10xf32>
    %c0_27 = arith.constant 0 : index
    %c0_28 = arith.constant 0 : index
    %45 = vector.load %arg17[%c0_27, %c0_28] : memref<10x32xf32, #tpu.memory_space<vmem>>, vector<10x32xf32>
    %cst_29 = arith.constant dense<0.000000e+00> : vector<2x32xf32>
    %46 = tpu.matmul %44, %45, %cst_29 {dimension_numbers = #tpu.dot_dimension_numbers<[1], [0], [0], [1], [0, 0, 1, 1], [], []>} : vector<2x10xf32>, vector<10x32xf32>, vector<2x32xf32> -> vector<2x32xf32>
    %c0_30 = arith.constant 0 : index
    %c0_31 = arith.constant 0 : index
    %47 = vector.load %arg18[%c0_30, %c0_31] : memref<10x32xf32, #tpu.memory_space<vmem>>, vector<10x32xf32>
    %cst_32 = arith.constant dense<0.000000e+00> : vector<2x32xf32>
    %48 = tpu.matmul %44, %47, %cst_32 {dimension_numbers = #tpu.dot_dimension_numbers<[1], [0], [0], [1], [0, 0, 1, 1], [], []>} : vector<2x10xf32>, vector<10x32xf32>, vector<2x32xf32> -> vector<2x32xf32>
    %49 = arith.mulf %46, %48 : vector<2x32xf32>
    %c0_33 = arith.constant 0 : index
    %c0_34 = arith.constant 0 : index
    %50 = vector.load %arg15[%c0_33, %c0_34] : memref<32x32xf32, #tpu.memory_space<vmem>>, vector<32x32xf32>
    %cst_35 = arith.constant dense<0.000000e+00> : vector<2x32xf32>
    %51 = tpu.matmul %49, %50, %cst_35 {dimension_numbers = #tpu.dot_dimension_numbers<[1], [0], [0], [1], [0, 0, 1, 1], [], []>} : vector<2x32xf32>, vector<32x32xf32>, vector<2x32xf32> -> vector<2x32xf32>
    %c0_36 = arith.constant 0 : index
    %c0_37 = arith.constant 0 : index
    %52 = vector.load %arg16[%c0_36, %c0_37] : memref<1x32xf32, #tpu.memory_space<vmem>>, vector<1x32xf32>
    %53 = vector.broadcast %52 : vector<1x32xf32> to vector<2x32xf32>
    %54 = arith.addf %51, %53 : vector<2x32xf32>
    %55 = tpu.iota {dimensions = array<i32: 0>} : vector<14x2xi32>
    %56 = tpu.iota {dimensions = array<i32: 1>} : vector<14x2xi32>
    %c7_i32 = arith.constant 7 : i32
    %57 = vector.broadcast %c7_i32 : i32 to vector<14x2xi32>
    %58 = arith.muli %56, %57 : vector<14x2xi32>
    %59 = arith.cmpi sge, %55, %58 : vector<14x2xi32>
    %c1_i32 = arith.constant 1 : i32
    %60 = vector.broadcast %c1_i32 : i32 to vector<14x2xi32>
    %61 = arith.addi %56, %60 : vector<14x2xi32>
    %c7_i32_38 = arith.constant 7 : i32
    %62 = vector.broadcast %c7_i32_38 : i32 to vector<14x2xi32>
    %63 = arith.muli %61, %62 : vector<14x2xi32>
    %64 = arith.cmpi slt, %55, %63 : vector<14x2xi32>
    %65 = arith.andi %59, %64 : vector<14x2xi1>
    %66 = arith.extui %65 : vector<14x2xi1> to vector<14x2xi32>
    %67 = arith.sitofp %66 : vector<14x2xi32> to vector<14x2xf32>
    %cst_39 = arith.constant dense<0.000000e+00> : vector<14x32xf32>
    %68 = tpu.matmul %67, %54, %cst_39 {dimension_numbers = #tpu.dot_dimension_numbers<[1], [0], [0], [1], [0, 0, 1, 1], [], []>} : vector<14x2xf32>, vector<2x32xf32>, vector<14x32xf32> -> vector<14x32xf32>
    %c0_40 = arith.constant 0 : index
    %c0_41 = arith.constant 0 : index
    %69 = vector.load %arg13[%c0_40, %c0_41] : memref<32x32xf32, #tpu.memory_space<vmem>>, vector<32x32xf32>
    %cst_42 = arith.constant dense<0.000000e+00> : vector<14x32xf32>
    %70 = tpu.matmul %23, %69, %cst_42 {dimension_numbers = #tpu.dot_dimension_numbers<[1], [0], [0], [1], [0, 0, 1, 1], [], []>} : vector<14x32xf32>, vector<32x32xf32>, vector<14x32xf32> -> vector<14x32xf32>
    %c0_43 = arith.constant 0 : index
    %c0_44 = arith.constant 0 : index
    %71 = vector.load %arg14[%c0_43, %c0_44] : memref<32x32xf32, #tpu.memory_space<vmem>>, vector<32x32xf32>
    %cst_45 = arith.constant dense<0.000000e+00> : vector<14x32xf32>
    %72 = tpu.matmul %38, %71, %cst_45 {dimension_numbers = #tpu.dot_dimension_numbers<[1], [0], [0], [1], [0, 0, 1, 1], [], []>} : vector<14x32xf32>, vector<32x32xf32>, vector<14x32xf32> -> vector<14x32xf32>
    %73 = arith.addf %70, %72 : vector<14x32xf32>
    %74 = arith.addf %73, %68 : vector<14x32xf32>
    %c0_46 = arith.constant 0 : index
    %c0_47 = arith.constant 0 : index
    %75 = vector.load %arg19[%c0_46, %c0_47] : memref<14x32xf32, #tpu.memory_space<vmem>>, vector<14x32xf32>
    tpu.vector_store %arg19[%c0_46, %c0_47], %74 {strides = array<i32>} : memref<14x32xf32, #tpu.memory_space<vmem>>, vector<14x32xf32>,
    return
  }
  func.func @transform_0(%arg0: i32) -> (i32, i32) {
    %c0_i32 = arith.constant 0 : i32
    %c0_i32_0 = arith.constant 0 : i32
    %c0_i32_1 = arith.constant 0 : i32
    return %c0_i32, %c0_i32_0 : i32, i32
  }
  func.func @transform_1(%arg0: i32) -> (i32, i32) {
    %c0_i32 = arith.constant 0 : i32
    %c0_i32_0 = arith.constant 0 : i32
    %c0_i32_1 = arith.constant 0 : i32
    return %c0_i32, %c0_i32_0 : i32, i32
  }
  func.func @transform_2(%arg0: i32) -> (i32, i32) {
    %c0_i32 = arith.constant 0 : i32
    %c0_i32_0 = arith.constant 0 : i32
    %c0_i32_1 = arith.constant 0 : i32
    return %c0_i32, %c0_i32_0 : i32, i32
  }
  func.func @transform_3(%arg0: i32) -> (i32, i32) {
    %c0_i32 = arith.constant 0 : i32
    %c0_i32_0 = arith.constant 0 : i32
    %c0_i32_1 = arith.constant 0 : i32
    return %c0_i32, %c0_i32_0 : i32, i32
  }
  func.func @transform_4(%arg0: i32) -> (i32, i32) {
    %c0_i32 = arith.constant 0 : i32
    %c0_i32_0 = arith.constant 0 : i32
    %c0_i32_1 = arith.constant 0 : i32
    return %c0_i32, %c0_i32_0 : i32, i32
  }
  func.func @transform_5(%arg0: i32) -> (i32, i32) {
    %c0_i32 = arith.constant 0 : i32
    %c0_i32_0 = arith.constant 0 : i32
    %c0_i32_1 = arith.constant 0 : i32
    return %c0_i32, %c0_i32_0 : i32, i32
  }
  func.func @transform_6(%arg0: i32) -> (i32, i32) {
    %c0_i32 = arith.constant 0 : i32
    %c0_i32_0 = arith.constant 0 : i32
    %c0_i32_1 = arith.constant 0 : i32
    return %c0_i32, %c0_i32_0 : i32, i32
  }
  func.func @transform_7(%arg0: i32) -> (i32, i32) {
    %c0_i32 = arith.constant 0 : i32
    %c0_i32_0 = arith.constant 0 : i32
    %c0_i32_1 = arith.constant 0 : i32
    return %c0_i32, %c0_i32_0 : i32, i32
  }
  func.func @transform_8(%arg0: i32) -> (i32, i32) {
    %c0_i32 = arith.constant 0 : i32
    %c0_i32_0 = arith.constant 0 : i32
    %c0_i32_1 = arith.constant 0 : i32
    return %c0_i32, %c0_i32_0 : i32, i32
  }
  func.func @transform_9(%arg0: i32) -> (i32, i32) {
    %c0_i32 = arith.constant 0 : i32
    %c0_i32_0 = arith.constant 0 : i32
    %c0_i32_1 = arith.constant 0 : i32
    return %c0_i32, %c0_i32_0 : i32, i32
  }
  func.func @transform_10(%arg0: i32) -> (i32, i32) {
    %c0_i32 = arith.constant 0 : i32
    %c0_i32_0 = arith.constant 0 : i32
    %c0_i32_1 = arith.constant 0 : i32
    return %c0_i32, %c0_i32_0 : i32, i32
  }
  func.func @transform_11(%arg0: i32) -> (i32, i32) {
    %c0_i32 = arith.constant 0 : i32
    %c0_i32_0 = arith.constant 0 : i32
    %c0_i32_1 = arith.constant 0 : i32
    return %c0_i32, %c0_i32_0 : i32, i32
  }
  func.func @transform_12(%arg0: i32) -> (i32, i32) {
    %c0_i32 = arith.constant 0 : i32
    %c0_i32_0 = arith.constant 0 : i32
    %c0_i32_1 = arith.constant 0 : i32
    return %c0_i32, %c0_i32_0 : i32, i32
  }
  func.func @transform_13(%arg0: i32) -> (i32, i32) {
    %c0_i32 = arith.constant 0 : i32
    %c0_i32_0 = arith.constant 0 : i32
    %c0_i32_1 = arith.constant 0 : i32
    return %c0_i32, %c0_i32_0 : i32, i32
  }
  func.func @transform_14(%arg0: i32) -> (i32, i32) {
    %c0_i32 = arith.constant 0 : i32
    %c0_i32_0 = arith.constant 0 : i32
    %c0_i32_1 = arith.constant 0 : i32
    return %c0_i32, %c0_i32_0 : i32, i32
  }
  func.func @transform_15(%arg0: i32) -> (i32, i32) {
    %c0_i32 = arith.constant 0 : i32
    %c0_i32_0 = arith.constant 0 : i32
    %c0_i32_1 = arith.constant 0 : i32
    return %c0_i32, %c0_i32_0 : i32, i32
  }
  func.func @transform_16(%arg0: i32) -> (i32, i32) {
    %c0_i32 = arith.constant 0 : i32
    %c0_i32_0 = arith.constant 0 : i32
    %c0_i32_1 = arith.constant 0 : i32
    return %c0_i32, %c0_i32_0 : i32, i32
  }
  func.func @transform_17(%arg0: i32) -> (i32, i32) {
    %c0_i32 = arith.constant 0 : i32
    %c0_i32_0 = arith.constant 0 : i32
    %c0_i32_1 = arith.constant 0 : i32
    return %c0_i32, %c0_i32_0 : i32, i32
  }
  func.func @transform_18(%arg0: i32) -> (i32, i32) {
    %c0_i32 = arith.constant 0 : i32
    %c0_i32_0 = arith.constant 0 : i32
    %c0_i32_1 = arith.constant 0 : i32
    return %c0_i32, %c0_i32_0 : i32, i32
  }
}

</mosaic_0001>

<llo_original>
// kernel: lpkt_forward.1
$region0: #{lpkt_forward.1}
  #allocation0 [shape = 'u32[]', space=smem, size = 0x4, offset = 0x4, fixed_abs, tag = 'smem constant byte address 0x4 - core index']
  #allocation1 [shape = 'u32[72,128]{1,0:T(1,128)}', space=vmem, size = 0x9000, scoped, tag = 'internal scratch']
  %s0 = inlined_call_operand.vmem [shape: s32[14,1], index: 0, kind: input, shape index: {}]
  %s1 = inlined_call_operand.vmem [shape: s32[14,1], index: 1, kind: input, shape index: {}]
  %s2 = inlined_call_operand.vmem [shape: s32[14,1], index: 2, kind: input, shape index: {}]
  %s3 = inlined_call_operand.vmem [shape: s32[14,1], index: 3, kind: input, shape index: {}]
  %s4 = inlined_call_operand.vmem [shape: s32[2,1], index: 4, kind: input, shape index: {}]
  %s5 = inlined_call_operand.hbm [shape: f32[10,32], index: 5, kind: input, shape index: {}]
  %s6 = inlined_call_operand.hbm [shape: f32[20,32], index: 6, kind: input, shape index: {}]
  %s7 = inlined_call_operand.vmem [shape: f32[30,32], index: 7, kind: input, shape index: {}]
  %s8 = inlined_call_operand.vmem [shape: f32[32,32], index: 8, kind: input, shape index: {}]
  %s9 = inlined_call_operand.hbm [shape: f32[32,32], index: 9, kind: input, shape index: {}]
  %s10 = inlined_call_operand.vmem [shape: f32[1,32], index: 10, kind: input, shape index: {}]
  %s11 = inlined_call_operand.vmem [shape: f32[1,32], index: 11, kind: input, shape index: {}]
  %s12 = inlined_call_operand.hbm [shape: f32[32,32], index: 12, kind: input, shape index: {}]
  %s13 = inlined_call_operand.hbm [shape: f32[32,32], index: 13, kind: input, shape index: {}]
  %s14 = inlined_call_operand.hbm [shape: f32[32,32], index: 14, kind: input, shape index: {}]
  %s15 = inlined_call_operand.vmem [shape: f32[1,32], index: 15, kind: input, shape index: {}]
  %s16 = inlined_call_operand.hbm [shape: f32[10,32], index: 16, kind: input, shape index: {}]
  %s17 = inlined_call_operand.hbm [shape: f32[10,32], index: 17, kind: input, shape index: {}]
  %s18 = inlined_call_operand.vmem [shape: f32[14,32], index: 18, kind: output, shape index: {}]
  %s19 = sld [smem:[#allocation0]]
  $region114: #{lpkt_forward.1} parent=0
    _
  %s21 = ssub.s32 1, %s19
  %s22 = scalar_select 0, %s21, %s19
  $region1: #{lpkt_forward.1} parent=0
    #allocation2 [shape = 'u8[8192]{0}', space=vmem, size = 0x2000, scoped, tag = 'input window, operand 5, single buffered']
    #allocation3 [shape = 's32[1]{0}', space=sflag, size = 0x4, scoped, tag = 'scoped memory for lpkt_forward.1']
    #allocation4 [shape = 'u8[12288]{0}', space=vmem, size = 0x3000, scoped, tag = 'input window, operand 6, single buffered']
    #allocation5 [shape = 's32[1]{0}', space=sflag, size = 0x4, scoped, tag = 'scoped memory for lpkt_forward.1']
    #allocation6 [shape = 'u8[16384]{0}', space=vmem, size = 0x4000, scoped, tag = 'input window, operand 9, single buffered']
    #allocation7 [shape = 'u8[16384]{0}', space=vmem, size = 0x4000, scoped, tag = 'input window, operand 12, single buffered']
    #allocation8 [shape = 's32[1]{0}', space=sflag, size = 0x4, scoped, tag = 'scoped memory for lpkt_forward.1']
    #allocation9 [shape = 'u8[16384]{0}', space=vmem, size = 0x4000, scoped, tag = 'input window, operand 13, single buffered']
    #allocation10 [shape = 'u8[16384]{0}', space=vmem, size = 0x4000, scoped, tag = 'input window, operand 14, single buffered']
    #allocation11 [shape = 's32[1]{0}', space=sflag, size = 0x4, scoped, tag = 'scoped memory for lpkt_forward.1']
    #allocation12 [shape = 'u8[8192]{0}', space=vmem, size = 0x2000, scoped, tag = 'input window, operand 16, single buffered']
    #allocation13 [shape = 'u8[8192]{0}', space=vmem, size = 0x2000, scoped, tag = 'input window, operand 17, single buffered']
    #allocation14 [shape = 's32[1]{0}', space=sflag, size = 0x4, scoped, tag = 'scoped memory for lpkt_forward.1']
    %23 = vsyncpa [#allocation3], 0
    %24 = vsyncpa [#allocation5], 0
    %25 = vsyncpa [#allocation8], 0
    %26 = vsyncpa [#allocation11], 0
    %27 = vsyncpa [#allocation14], 0
    // Predicated region
    $region2: #{lpkt_forward.1} parent=1 // pred_check
      _
    $region3: #{lpkt_forward.1} parent=1 // pred_check_branch
      %29 = sbr.rel (0) target = $region5
    $region4: #{lpkt_forward.1} parent=1 // pred_region
      _
    $region5: #{lpkt_forward.1} parent=1 // pred_fallthru
      _
    // Predicated region
    $region6: #{lpkt_forward.1} parent=1 // pred_check
      _
    $region7: #{lpkt_forward.1} parent=1 // pred_check_branch
      %31 = sbr.rel (0) target = $region9
    $region8: #{lpkt_forward.1} parent=1 // pred_region
      _
    $region9: #{lpkt_forward.1} parent=1 // pred_fallthru
      _
    // Predicated region
    $region10: #{lpkt_forward.1} parent=1 // pred_check
      _
    $region11: #{lpkt_forward.1} parent=1 // pred_check_branch
      %33 = sbr.rel (0) target = $region13
    $region12: #{lpkt_forward.1} parent=1 // pred_region
      _
    $region13: #{lpkt_forward.1} parent=1 // pred_fallthru
      _
    // Predicated region
    $region14: #{lpkt_forward.1} parent=1 // pred_check
      _
    $region15: #{lpkt_forward.1} parent=1 // pred_check_branch
      %35 = sbr.rel (0) target = $region17
    $region16: #{lpkt_forward.1} parent=1 // pred_region
      _
    $region17: #{lpkt_forward.1} parent=1 // pred_fallthru
      _
    // Predicated region
    $region18: #{lpkt_forward.1} parent=1 // pred_check
      _
    $region19: #{lpkt_forward.1} parent=1 // pred_check_branch
      %37 = sbr.rel (0) target = $region21
    $region20: #{lpkt_forward.1} parent=1 // pred_region
      _
    $region21: #{lpkt_forward.1} parent=1 // pred_fallthru
      _
    // Predicated region
    $region22: #{lpkt_forward.1} parent=1 // pred_check
      _
    $region23: #{lpkt_forward.1} parent=1 // pred_check_branch
      %39 = sbr.rel (0) target = $region25
    $region24: #{lpkt_forward.1} parent=1 // pred_region
      %41 = vsyncadd [#allocation3], 0
      %s42 = sshll.u32 %s5, 4
      %s43 = int_to_ptr.hbm [resolvable:$true] %s42
      %s44 = sshll.u32 [#allocation2], 4
      %s45 = int_to_ptr.vmem [resolvable:$true] %s44
      %50 = dma.hbm_to_vmem [thread:$0]  %s43, 256, %s45, [#allocation3], 128, 128, 8
    $region25: #{lpkt_forward.1} parent=1 // pred_fallthru
      _
    // Predicated region
    $region26: #{lpkt_forward.1} parent=1 // pred_check
      _
    $region27: #{lpkt_forward.1} parent=1 // pred_check_branch
      %52 = sbr.rel (0) target = $region29
    $region28: #{lpkt_forward.1} parent=1 // pred_region
      %54 = vsyncadd [#allocation5], 0
      %s55 = sshll.u32 %s6, 4
      %s56 = int_to_ptr.hbm [resolvable:$true] %s55
      %s57 = sshll.u32 [#allocation4], 4
      %s58 = int_to_ptr.vmem [resolvable:$true] %s57
      %63 = dma.hbm_to_vmem [thread:$0]  %s56, 384, %s58, [#allocation5], 128, 128, 8
    $region29: #{lpkt_forward.1} parent=1 // pred_fallthru
      _
    // Predicated region
    $region30: #{lpkt_forward.1} parent=1 // pred_check
      _
    $region31: #{lpkt_forward.1} parent=1 // pred_check_branch
      %65 = sbr.rel (0) target = $region33
    $region32: #{lpkt_forward.1} parent=1 // pred_region
      _
    $region33: #{lpkt_forward.1} parent=1 // pred_fallthru
      _
    // Predicated region
    $region34: #{lpkt_forward.1} parent=1 // pred_check
      _
    $region35: #{lpkt_forward.1} parent=1 // pred_check_branch
      %67 = sbr.rel (0) target = $region37
    $region36: #{lpkt_forward.1} parent=1 // pred_region
      _
    $region37: #{lpkt_forward.1} parent=1 // pred_fallthru
      _
    // Predicated region
    $region38: #{lpkt_forward.1} parent=1 // pred_check
      _
    $region39: #{lpkt_forward.1} parent=1 // pred_check_branch
      %69 = sbr.rel (0) target = $region41
    $region40: #{lpkt_forward.1} parent=1 // pred_region
      %71 = vsyncadd [#allocation5], 0
      %s72 = sshll.u32 %s9, 4
      %s73 = int_to_ptr.hbm [resolvable:$true] %s72
      %s74 = sshll.u32 [#allocation6], 4
      %s75 = int_to_ptr.vmem [resolvable:$true] %s74
      %80 = dma.hbm_to_vmem [thread:$0]  %s73, 512, %s75, [#allocation5], 128, 128, 8
    $region41: #{lpkt_forward.1} parent=1 // pred_fallthru
      _
    // Predicated region
    $region42: #{lpkt_forward.1} parent=1 // pred_check
      _
    $region43: #{lpkt_forward.1} parent=1 // pred_check_branch
      %82 = sbr.rel (0) target = $region45
    $region44: #{lpkt_forward.1} parent=1 // pred_region
      _
    $region45: #{lpkt_forward.1} parent=1 // pred_fallthru
      _
    // Predicated region
    $region46: #{lpkt_forward.1} parent=1 // pred_check
      _
    $region47: #{lpkt_forward.1} parent=1 // pred_check_branch
      %84 = sbr.rel (0) target = $region49
    $region48: #{lpkt_forward.1} parent=1 // pred_region
      _
    $region49: #{lpkt_forward.1} parent=1 // pred_fallthru
      _
    // Predicated region
    $region50: #{lpkt_forward.1} parent=1 // pred_check
      _
    $region51: #{lpkt_forward.1} parent=1 // pred_check_branch
      %86 = sbr.rel (0) target = $region53
    $region52: #{lpkt_forward.1} parent=1 // pred_region
      %88 = vsyncadd [#allocation8], 0
      %s89 = sshll.u32 %s12, 4
      %s90 = int_to_ptr.hbm [resolvable:$true] %s89
      %s91 = sshll.u32 [#allocation7], 4
      %s92 = int_to_ptr.vmem [resolvable:$true] %s91
      %97 = dma.hbm_to_vmem [thread:$0]  %s90, 512, %s92, [#allocation8], 128, 128, 8
    $region53: #{lpkt_forward.1} parent=1 // pred_fallthru
      _
    // Predicated region
    $region54: #{lpkt_forward.1} parent=1 // pred_check
      _
    $region55: #{lpkt_forward.1} parent=1 // pred_check_branch
      %99 = sbr.rel (0) target = $region57
    $region56: #{lpkt_forward.1} parent=1 // pred_region
      %101 = vsyncadd [#allocation8], 0
      %s102 = sshll.u32 %s13, 4
      %s103 = int_to_ptr.hbm [resolvable:$true] %s102
      %s104 = sshll.u32 [#allocation9], 4
      %s105 = int_to_ptr.vmem [resolvable:$true] %s104
      %110 = dma.hbm_to_vmem [thread:$0]  %s103, 512, %s105, [#allocation8], 128, 128, 8
    $region57: #{lpkt_forward.1} parent=1 // pred_fallthru
      _
    // Predicated region
    $region58: #{lpkt_forward.1} parent=1 // pred_check
      _
    $region59: #{lpkt_forward.1} parent=1 // pred_check_branch
      %112 = sbr.rel (0) target = $region61
    $region60: #{lpkt_forward.1} parent=1 // pred_region
      %114 = vsyncadd [#allocation11], 0
      %s115 = sshll.u32 %s14, 4
      %s116 = int_to_ptr.hbm [resolvable:$true] %s115
      %s117 = sshll.u32 [#allocation10], 4
      %s118 = int_to_ptr.vmem [resolvable:$true] %s117
      %123 = dma.hbm_to_vmem [thread:$0]  %s116, 512, %s118, [#allocation11], 128, 128, 8
    $region61: #{lpkt_forward.1} parent=1 // pred_fallthru
      _
    // Predicated region
    $region62: #{lpkt_forward.1} parent=1 // pred_check
      _
    $region63: #{lpkt_forward.1} parent=1 // pred_check_branch
      %125 = sbr.rel (0) target = $region65
    $region64: #{lpkt_forward.1} parent=1 // pred_region
      _
    $region65: #{lpkt_forward.1} parent=1 // pred_fallthru
      _
    // Predicated region
    $region66: #{lpkt_forward.1} parent=1 // pred_check
      _
    $region67: #{lpkt_forward.1} parent=1 // pred_check_branch
      %127 = sbr.rel (0) target = $region69
    $region68: #{lpkt_forward.1} parent=1 // pred_region
      %129 = vsyncadd [#allocation11], 0
      %s130 = sshll.u32 %s16, 4
      %s131 = int_to_ptr.hbm [resolvable:$true] %s130
      %s132 = sshll.u32 [#allocation12], 4
      %s133 = int_to_ptr.vmem [resolvable:$true] %s132
      %138 = dma.hbm_to_vmem [thread:$0]  %s131, 256, %s133, [#allocation11], 128, 128, 8
    $region69: #{lpkt_forward.1} parent=1 // pred_fallthru
      _
    // Predicated region
    $region70: #{lpkt_forward.1} parent=1 // pred_check
      _
    $region71: #{lpkt_forward.1} parent=1 // pred_check_branch
      %140 = sbr.rel (0) target = $region73
    $region72: #{lpkt_forward.1} parent=1 // pred_region
      %142 = vsyncadd [#allocation14], 0
      %s143 = sshll.u32 %s17, 4
      %s144 = int_to_ptr.hbm [resolvable:$true] %s143
      %s145 = sshll.u32 [#allocation13], 4
      %s146 = int_to_ptr.vmem [resolvable:$true] %s145
      %151 = dma.hbm_to_vmem [thread:$0]  %s144, 256, %s146, [#allocation14], 128, 128, 8
    $region73: #{lpkt_forward.1} parent=1 // pred_fallthru
      _
    // Predicated region
    $region74: #{lpkt_forward.1} parent=1 // pred_check
      _
    $region75: #{lpkt_forward.1} parent=1 // pred_check_branch
      %153 = sbr.rel (0) target = $region77
    $region76: #{lpkt_forward.1} parent=1 // pred_region
      %155 = dma.done [#allocation3], 256
    $region77: #{lpkt_forward.1} parent=1 // pred_fallthru
      _
    // Predicated region
    $region78: #{lpkt_forward.1} parent=1 // pred_check
      _
    $region79: #{lpkt_forward.1} parent=1 // pred_check_branch
      %157 = sbr.rel (0) target = $region81
    $region80: #{lpkt_forward.1} parent=1 // pred_region
      %159 = dma.done [#allocation5], 384
    $region81: #{lpkt_forward.1} parent=1 // pred_fallthru
      _
    // Predicated region
    $region82: #{lpkt_forward.1} parent=1 // pred_check
      _
    $region83: #{lpkt_forward.1} parent=1 // pred_check_branch
      %161 = sbr.rel (0) target = $region85
    $region84: #{lpkt_forward.1} parent=1 // pred_region
      %163 = dma.done [#allocation5], 512
    $region85: #{lpkt_forward.1} parent=1 // pred_fallthru
      _
    // Predicated region
    $region86: #{lpkt_forward.1} parent=1 // pred_check
      _
    $region87: #{lpkt_forward.1} parent=1 // pred_check_branch
      %165 = sbr.rel (0) target = $region89
    $region88: #{lpkt_forward.1} parent=1 // pred_region
      %167 = dma.done [#allocation8], 512
    $region89: #{lpkt_forward.1} parent=1 // pred_fallthru
      _
    // Predicated region
    $region90: #{lpkt_forward.1} parent=1 // pred_check
      _
    $region91: #{lpkt_forward.1} parent=1 // pred_check_branch
      %169 = sbr.rel (0) target = $region93
    $region92: #{lpkt_forward.1} parent=1 // pred_region
      %171 = dma.done [#allocation8], 512
    $region93: #{lpkt_forward.1} parent=1 // pred_fallthru
      _
    // Predicated region
    $region94: #{lpkt_forward.1} parent=1 // pred_check
      _
    $region95: #{lpkt_forward.1} parent=1 // pred_check_branch
      %173 = sbr.rel (0) target = $region97
    $region96: #{lpkt_forward.1} parent=1 // pred_region
      %175 = dma.done [#allocation11], 512
    $region97: #{lpkt_forward.1} parent=1 // pred_fallthru
      _
    // Predicated region
    $region98: #{lpkt_forward.1} parent=1 // pred_check
      _
    $region99: #{lpkt_forward.1} parent=1 // pred_check_branch
      %177 = sbr.rel (0) target = $region101
    $region100: #{lpkt_forward.1} parent=1 // pred_region
      %179 = dma.done [#allocation11], 256
    $region101: #{lpkt_forward.1} parent=1 // pred_fallthru
      _
    // Predicated region
    $region102: #{lpkt_forward.1} parent=1 // pred_check
      _
    $region103: #{lpkt_forward.1} parent=1 // pred_check_branch
      %181 = sbr.rel (0) target = $region105
    $region104: #{lpkt_forward.1} parent=1 // pred_region
      %183 = dma.done [#allocation14], 256
    $region105: #{lpkt_forward.1} parent=1 // pred_fallthru
      _
    %v184 = vld [vmem:[%s0] sm:$0xff]
    %v185 = vld [vmem:[%s0 + $0x8] sm:$0x3f]
    %v186 = vlaneseq
    %v187 = vand.u32 %v186, 127
    %188 = vset.pattern.permute.xlu0 0
    %189 = vperm.xlu0 %188, %v184
    %v190 = vpop.permute.xlu0 %189
    %191 = vset.pattern.permute.xlu0 0
    %192 = vperm.xlu0 %191, %v185
    %v193 = vpop.permute.xlu0 %192
    %vm194 = vcmp.eq.s32.totalorder %v190, %v187
    %vm195 = vcmp.eq.s32.totalorder %v193, %v187
    %v196 = vsel %vm194, 1, 0
    %v197 = vsel %vm195, 1, 0
    %v198 = vcvt.s32.f32 %v196
    %v199 = vcvt.s32.f32 %v197
    %v200 = vld [vmem:[%s1] sm:$0xff]
    %v201 = vld [vmem:[%s1 + $0x8] sm:$0x3f]
    %202 = vset.pattern.permute.xlu0 0
    %203 = vperm.xlu0 %202, %v200
    %v204 = vpop.permute.xlu0 %203
    %205 = vset.pattern.permute.xlu0 0
    %206 = vperm.xlu0 %205, %v201
    %v207 = vpop.permute.xlu0 %206
    %vm208 = vcmp.eq.s32.totalorder %v204, %v187
    %vm209 = vcmp.eq.s32.totalorder %v207, %v187
    %v210 = vsel %vm208, 1, 0
    %v211 = vsel %vm209, 1, 0
    %v212 = vcvt.s32.f32 %v210
    %v213 = vcvt.s32.f32 %v211
    %v214 = vld [vmem:[%s2] sm:$0xff]
    %v215 = vld [vmem:[%s2 + $0x8] sm:$0x3f]
    %216 = vset.pattern.permute.xlu0 0
    %217 = vperm.xlu0 %216, %v214
    %v218 = vpop.permute.xlu0 %217
    %219 = vset.pattern.permute.xlu0 0
    %220 = vperm.xlu0 %219, %v215
    %v221 = vpop.permute.xlu0 %220
    %vm222 = vcmp.eq.s32.totalorder %v218, %v187
    %vm223 = vcmp.eq.s32.totalorder %v221, %v187
    %v224 = vsel %vm222, 1, 0
    %v225 = vsel %vm223, 1, 0
    %v226 = vcvt.s32.f32 %v224
    %v227 = vcvt.s32.f32 %v225
    %v228 = vld [vmem:[#allocation2] sm:$0xff]
    %v229 = vld [vmem:[#allocation2 + $0x8] sm:$0x3]
    %vm230 = vcmask 80896
    %v232 = vsel %vm230, %v198, 0
    %v235 = vsel %vm230, %v199, 0
    %vm237 = vcmask 1041408
    %v239 = vsel %vm237, %v229, 0
    %241 = vmatpush.msra.mxu0 0.0
    %242 = vmatpush.msra.mxu0 0.0
    %243 = vmatpush.msra.mxu0 0.0
    %244 = vmatpush.msra.mxu0 0.0
    %245 = vmatpush.msra.mxu0 0.0
    %246 = vmatpush.msra.mxu0 0.0
    %247 = vmatpush.msra.mxu0 0.0
    %248 = vmatpush.msra.mxu0 0.0
    %249 = vmatpush.msra.mxu0 0.0
    %250 = vmatpush.msra.mxu0 0.0
    %251 = vmatpush.msra.mxu0 0.0
    %252 = vmatpush.msra.mxu0 0.0
    %253 = vmatpush.msra.mxu0 0.0
    %254 = vmatpush.msra.mxu0 0.0
    %255 = vmatpush.msra.mxu0 %v239
    %256 = vmatpush.msra.mxu0 %v228
    %257 = vmatmul.f32.gmra.mxu0 %v232
    %v258 = vpop.f32.mrf.mxu0
    %v259 = vadd.f32 0.0, %v258
    %260 = vmatmul.f32.gmra.mxu0 %v235
    %v261 = vpop.f32.mrf.mxu0
    %v262 = vadd.f32 0.0, %v261
    %263 = vdwg.mxu0
    %v264 = vld [vmem:[#allocation4] sm:$0xff]
    %v265 = vld [vmem:[#allocation4 + $0x8] sm:$0xff]
    %v266 = vld [vmem:[#allocation4 + $0x10] sm:$0xf]
    %vm267 = vcmask 162816
    %v269 = vsel %vm267, %v212, 0
    %v272 = vsel %vm267, %v213, 0
    %vm274 = vcmask 1043456
    %v276 = vsel %vm274, %v266, 0
    %278 = vmatpush.msra.mxu0 0.0
    %279 = vmatpush.msra.mxu0 0.0
    %280 = vmatpush.msra.mxu0 0.0
    %281 = vmatpush.msra.mxu0 0.0
    %282 = vmatpush.msra.mxu0 0.0
    %283 = vmatpush.msra.mxu0 0.0
    %284 = vmatpush.msra.mxu0 0.0
    %285 = vmatpush.msra.mxu0 0.0
    %286 = vmatpush.msra.mxu0 0.0
    %287 = vmatpush.msra.mxu0 0.0
    %288 = vmatpush.msra.mxu0 0.0
    %289 = vmatpush.msra.mxu0 0.0
    %290 = vmatpush.msra.mxu0 0.0
    %291 = vmatpush.msra.mxu0 %v276
    %292 = vmatpush.msra.mxu0 %v265
    %293 = vmatpush.msra.mxu0 %v264
    %294 = vmatmul.f32.gmra.mxu0 %v269
    %v295 = vpop.f32.mrf.mxu0
    %v296 = vadd.f32 0.0, %v295
    %297 = vmatmul.f32.gmra.mxu0 %v272
    %v298 = vpop.f32.mrf.mxu0
    %v299 = vadd.f32 0.0, %v298
    %300 = vdwg.mxu0
    %v301 = vld [vmem:[%s7] sm:$0xff]
    %v302 = vld [vmem:[%s7 + $0x8] sm:$0xff]
    %v303 = vld [vmem:[%s7 + $0x10] sm:$0xff]
    %v304 = vld [vmem:[%s7 + $0x18] sm:$0x3f]
    %vm305 = vcmask 244736
    %v307 = vsel %vm305, %v226, 0
    %v310 = vsel %vm305, %v227, 0
    %vm312 = vcmask 1045504
    %v314 = vsel %vm312, %v304, 0
    %316 = vmatpush.msra.mxu0 0.0
    %317 = vmatpush.msra.mxu0 0.0
    %318 = vmatpush.msra.mxu0 0.0
    %319 = vmatpush.msra.mxu0 0.0
    %320 = vmatpush.msra.mxu0 0.0
    %321 = vmatpush.msra.mxu0 0.0
    %322 = vmatpush.msra.mxu0 0.0
    %323 = vmatpush.msra.mxu0 0.0
    %324 = vmatpush.msra.mxu0 0.0
    %325 = vmatpush.msra.mxu0 0.0
    %326 = vmatpush.msra.mxu0 0.0
    %327 = vmatpush.msra.mxu0 0.0
    %328 = vmatpush.msra.mxu0 %v314
    %329 = vmatpush.msra.mxu0 %v303
    %330 = vmatpush.msra.mxu0 %v302
    %331 = vmatpush.msra.mxu0 %v301
    %332 = vmatmul.f32.gmra.mxu0 %v307
    %v333 = vpop.f32.mrf.mxu0
    %v334 = vadd.f32 0.0, %v333
    %335 = vmatmul.f32.gmra.mxu0 %v310
    %v336 = vpop.f32.mrf.mxu0
    %v337 = vadd.f32 0.0, %v336
    %338 = vdwg.mxu0
    %v339 = vld [vmem:[%s3] sm:$0xff]
    %v340 = vld [vmem:[%s3 + $0x8] sm:$0x3f]
    %v341 = vcvt.s32.f32 %v339
    %v342 = vcvt.s32.f32 %v340
    %v343 = vld [vmem:[%s8] sm:$0xff]
    %v344 = vld [vmem:[%s8 + $0x8] sm:$0xff]
    %v345 = vld [vmem:[%s8 + $0x10] sm:$0xff]
    %v346 = vld [vmem:[%s8 + $0x18] sm:$0xff]
    %v347 = vld [vmem:[#allocation6] sm:$0xff]
    %v348 = vld [vmem:[#allocation6 + $0x8] sm:$0xff]
    %v349 = vld [vmem:[#allocation6 + $0x10] sm:$0xff]
    %v350 = vld [vmem:[#allocation6 + $0x18] sm:$0xff]
    %vm351 = vcmask 261120
    %v353 = vsel %vm351, %v296, 0
    %v356 = vsel %vm351, %v299, 0
    %358 = vmatpush.msra.mxu0 0.0
    %359 = vmatpush.msra.mxu0 0.0
    %360 = vmatpush.msra.mxu0 0.0
    %361 = vmatpush.msra.mxu0 0.0
    %362 = vmatpush.msra.mxu0 0.0
    %363 = vmatpush.msra.mxu0 0.0
    %364 = vmatpush.msra.mxu0 0.0
    %365 = vmatpush.msra.mxu0 0.0
    %366 = vmatpush.msra.mxu0 0.0
    %367 = vmatpush.msra.mxu0 0.0
    %368 = vmatpush.msra.mxu0 0.0
    %369 = vmatpush.msra.mxu0 0.0
    %370 = vmatpush.msra.mxu0 %v350
    %371 = vmatpush.msra.mxu0 %v349
    %372 = vmatpush.msra.mxu0 %v348
    %373 = vmatpush.msra.mxu0 %v347
    %374 = vmatmul.f32.gmra.mxu0 %v353
    %v375 = vpop.f32.mrf.mxu0
    %v376 = vadd.f32 0.0, %v375
    %377 = vmatmul.f32.gmra.mxu0 %v356
    %v378 = vpop.f32.mrf.mxu0
    %v379 = vadd.f32 0.0, %v378
    %380 = vdwg.mxu0
    %v382 = vsel %vm351, %v259, 0
    %v385 = vsel %vm351, %v262, 0
    %387 = vmatpush.msra.mxu0 0.0
    %388 = vmatpush.msra.mxu0 0.0
    %389 = vmatpush.msra.mxu0 0.0
    %390 = vmatpush.msra.mxu0 0.0
    %391 = vmatpush.msra.mxu0 0.0
    %392 = vmatpush.msra.mxu0 0.0
    %393 = vmatpush.msra.mxu0 0.0
    %394 = vmatpush.msra.mxu0 0.0
    %395 = vmatpush.msra.mxu0 0.0
    %396 = vmatpush.msra.mxu0 0.0
    %397 = vmatpush.msra.mxu0 0.0
    %398 = vmatpush.msra.mxu0 0.0
    %399 = vmatpush.msra.mxu0 %v346
    %400 = vmatpush.msra.mxu0 %v345
    %401 = vmatpush.msra.mxu0 %v344
    %402 = vmatpush.msra.mxu0 %v343
    %403 = vmatmul.f32.gmra.mxu0 %v382
    %v404 = vpop.f32.mrf.mxu0
    %v405 = vadd.f32 %v376, %v404
    %406 = vmatmul.f32.gmra.mxu0 %v385
    %v407 = vpop.f32.mrf.mxu0
    %v408 = vadd.f32 %v379, %v407
    %409 = vdwg.mxu0
    %v410 = vld [vmem:[%s10] sm:$0x1]
    %412 = vset.pattern.permute.xlu0 0
    %413 = vperm.xlu0 %412, %v341
    %v414 = vpop.permute.xlu0 %413
    %417 = vset.pattern.permute.xlu0 0
    %418 = vperm.xlu0 %417, %v342
    %v419 = vpop.permute.xlu0 %418
    %v422 = vperm.slane %v410, 0
    %v424 = vmul.f32 %v414, %v422
    %v425 = vmul.f32 %v419, %v422
    %v426 = vadd.f32 %v405, %v424
    %v427 = vadd.f32 %v408, %v425
    %v428 = vld [vmem:[%s11] sm:$0x1]
    %v430 = vperm.slane %v428, 0
    %v432 = vadd.f32 %v426, %v430
    %v433 = vadd.f32 %v427, %v430
    %v434 = vld [vmem:[%s4] sm:$0x3]
    %435 = vset.pattern.permute.xlu0 0
    %436 = vperm.xlu0 %435, %v434
    %v437 = vpop.permute.xlu0 %436
    %vm438 = vcmp.eq.s32.totalorder %v437, %v187
    %v439 = vsel %vm438, 1, 0
    %v440 = vcvt.s32.f32 %v439
    %v441 = vld [vmem:[#allocation12] sm:$0xff]
    %v442 = vld [vmem:[#allocation12 + $0x8] sm:$0x3]
    %v444 = vsel %vm230, %v440, 0
    %v447 = vsel %vm237, %v442, 0
    %449 = vmatpush.msra.mxu0 0.0
    %450 = vmatpush.msra.mxu0 0.0
    %451 = vmatpush.msra.mxu0 0.0
    %452 = vmatpush.msra.mxu0 0.0
    %453 = vmatpush.msra.mxu0 0.0
    %454 = vmatpush.msra.mxu0 0.0
    %455 = vmatpush.msra.mxu0 0.0
    %456 = vmatpush.msra.mxu0 0.0
    %457 = vmatpush.msra.mxu0 0.0
    %458 = vmatpush.msra.mxu0 0.0
    %459 = vmatpush.msra.mxu0 0.0
    %460 = vmatpush.msra.mxu0 0.0
    %461 = vmatpush.msra.mxu0 0.0
    %462 = vmatpush.msra.mxu0 0.0
    %463 = vmatpush.msra.mxu0 %v447
    %464 = vmatpush.msra.mxu0 %v441
    %465 = vmatmul.f32.gmra.mxu0 %v444
    %v466 = vpop.f32.mrf.mxu0
    %v467 = vadd.f32 0.0, %v466
    %468 = vdwg.mxu0
    %v469 = vld [vmem:[#allocation13] sm:$0xff]
    %v470 = vld [vmem:[#allocation13 + $0x8] sm:$0x3]
    %v472 = vsel %vm237, %v470, 0
    %474 = vmatpush.msra.mxu0 0.0
    %475 = vmatpush.msra.mxu0 0.0
    %476 = vmatpush.msra.mxu0 0.0
    %477 = vmatpush.msra.mxu0 0.0
    %478 = vmatpush.msra.mxu0 0.0
    %479 = vmatpush.msra.mxu0 0.0
    %480 = vmatpush.msra.mxu0 0.0
    %481 = vmatpush.msra.mxu0 0.0
    %482 = vmatpush.msra.mxu0 0.0
    %483 = vmatpush.msra.mxu0 0.0
    %484 = vmatpush.msra.mxu0 0.0
    %485 = vmatpush.msra.mxu0 0.0
    %486 = vmatpush.msra.mxu0 0.0
    %487 = vmatpush.msra.mxu0 0.0
    %488 = vmatpush.msra.mxu0 %v472
    %489 = vmatpush.msra.mxu0 %v469
    %490 = vmatmul.f32.gmra.mxu0 %v444
    %v491 = vpop.f32.mrf.mxu0
    %v492 = vadd.f32 0.0, %v491
    %493 = vdwg.mxu0
    %v494 = vmul.f32 %v467, %v492
    %v495 = vld [vmem:[#allocation10] sm:$0xff]
    %v496 = vld [vmem:[#allocation10 + $0x8] sm:$0xff]
    %v497 = vld [vmem:[#allocation10 + $0x10] sm:$0xff]
    %v498 = vld [vmem:[#allocation10 + $0x18] sm:$0xff]
    %v499 = vld [vmem:[%s15] sm:$0x1]
    %v501 = vperm.slane %v499, 0
    %v504 = vsel %vm351, %v494, 0
    %506 = vmatpush.msra.mxu0 0.0
    %507 = vmatpush.msra.mxu0 0.0
    %508 = vmatpush.msra.mxu0 0.0
    %509 = vmatpush.msra.mxu0 0.0
    %510 = vmatpush.msra.mxu0 0.0
    %511 = vmatpush.msra.mxu0 0.0
    %512 = vmatpush.msra.mxu0 0.0
    %513 = vmatpush.msra.mxu0 0.0
    %514 = vmatpush.msra.mxu0 0.0
    %515 = vmatpush.msra.mxu0 0.0
    %516 = vmatpush.msra.mxu0 0.0
    %517 = vmatpush.msra.mxu0 0.0
    %518 = vmatpush.msra.mxu0 %v498
    %519 = vmatpush.msra.mxu0 %v497
    %520 = vmatpush.msra.mxu0 %v496
    %521 = vmatpush.msra.mxu0 %v495
    %522 = vmatmul.f32.gmra.mxu0 %v504
    %v523 = vpop.f32.mrf.mxu0
    %v524 = vadd.f32 %v501, %v523
    %525 = vdwg.mxu0
    %v526 = vlaneseq
    %v527 = vshrl.u32 %v526, 7
    %v528 = vadd.s32 %v527, 8
    %v529 = vmul.u32 %v187, 7
    %vm530 = vcmp.ge.s32.totalorder %v527, %v529
    %vm531 = vcmp.ge.s32.totalorder %v528, %v529
    %v532 = vadd.s32 %v187, 1
    %v533 = vmul.u32 %v532, 7
    %vm534 = vcmp.lt.s32.totalorder %v527, %v533
    %vm535 = vcmp.lt.s32.totalorder %v528, %v533
    %vm536 = vmand %vm530, %vm534
    %vm537 = vmand %vm531, %vm535
    %v538 = vsel %vm536, 1, 0
    %v539 = vsel %vm537, 1, 0
    %v540 = vcvt.s32.f32 %v538
    %v541 = vcvt.s32.f32 %v539
    %vm542 = vcmask 15360
    %v544 = vsel %vm542, %v540, 0
    %v547 = vsel %vm542, %v541, 0
    %v550 = vsel %vm237, %v524, 0
    %552 = vmatpush.msra.mxu0 0.0
    %553 = vmatpush.msra.mxu0 0.0
    %554 = vmatpush.msra.mxu0 0.0
    %555 = vmatpush.msra.mxu0 0.0
    %556 = vmatpush.msra.mxu0 0.0
    %557 = vmatpush.msra.mxu0 0.0
    %558 = vmatpush.msra.mxu0 0.0
    %559 = vmatpush.msra.mxu0 0.0
    %560 = vmatpush.msra.mxu0 0.0
    %561 = vmatpush.msra.mxu0 0.0
    %562 = vmatpush.msra.mxu0 0.0
    %563 = vmatpush.msra.mxu0 0.0
    %564 = vmatpush.msra.mxu0 0.0
    %565 = vmatpush.msra.mxu0 0.0
    %566 = vmatpush.msra.mxu0 0.0
    %567 = vmatpush.msra.mxu0 %v550
    %568 = vmatmul.f32.gmra.mxu0 %v544
    %v569 = vpop.f32.mrf.mxu0
    %v570 = vadd.f32 0.0, %v569
    %571 = vmatmul.f32.gmra.mxu0 %v547
    %v572 = vpop.f32.mrf.mxu0
    %v573 = vadd.f32 0.0, %v572
    %574 = vdwg.mxu0
    %v575 = vld [vmem:[#allocation7] sm:$0xff]
    %v576 = vld [vmem:[#allocation7 + $0x8] sm:$0xff]
    %v577 = vld [vmem:[#allocation7 + $0x10] sm:$0xff]
    %v578 = vld [vmem:[#allocation7 + $0x18] sm:$0xff]
    %v579 = vld [vmem:[#allocation9] sm:$0xff]
    %v580 = vld [vmem:[#allocation9 + $0x8] sm:$0xff]
    %v581 = vld [vmem:[#allocation9 + $0x10] sm:$0xff]
    %v582 = vld [vmem:[#allocation9 + $0x18] sm:$0xff]
    %v584 = vsel %vm351, %v432, 0
    %v587 = vsel %vm351, %v433, 0
    %589 = vmatpush.msra.mxu0 0.0
    %590 = vmatpush.msra.mxu0 0.0
    %591 = vmatpush.msra.mxu0 0.0
    %592 = vmatpush.msra.mxu0 0.0
    %593 = vmatpush.msra.mxu0 0.0
    %594 = vmatpush.msra.mxu0 0.0
    %595 = vmatpush.msra.mxu0 0.0
    %596 = vmatpush.msra.mxu0 0.0
    %597 = vmatpush.msra.mxu0 0.0
    %598 = vmatpush.msra.mxu0 0.0
    %599 = vmatpush.msra.mxu0 0.0
    %600 = vmatpush.msra.mxu0 0.0
    %601 = vmatpush.msra.mxu0 %v582
    %602 = vmatpush.msra.mxu0 %v581
    %603 = vmatpush.msra.mxu0 %v580
    %604 = vmatpush.msra.mxu0 %v579
    %605 = vmatmul.f32.gmra.mxu0 %v584
    %v606 = vpop.f32.mrf.mxu0
    %v607 = vadd.f32 0.0, %v606
    %608 = vmatmul.f32.gmra.mxu0 %v587
    %v609 = vpop.f32.mrf.mxu0
    %v610 = vadd.f32 0.0, %v609
    %611 = vdwg.mxu0
    %v613 = vsel %vm351, %v334, 0
    %v616 = vsel %vm351, %v337, 0
    %618 = vmatpush.msra.mxu0 0.0
    %619 = vmatpush.msra.mxu0 0.0
    %620 = vmatpush.msra.mxu0 0.0
    %621 = vmatpush.msra.mxu0 0.0
    %622 = vmatpush.msra.mxu0 0.0
    %623 = vmatpush.msra.mxu0 0.0
    %624 = vmatpush.msra.mxu0 0.0
    %625 = vmatpush.msra.mxu0 0.0
    %626 = vmatpush.msra.mxu0 0.0
    %627 = vmatpush.msra.mxu0 0.0
    %628 = vmatpush.msra.mxu0 0.0
    %629 = vmatpush.msra.mxu0 0.0
    %630 = vmatpush.msra.mxu0 %v578
    %631 = vmatpush.msra.mxu0 %v577
    %632 = vmatpush.msra.mxu0 %v576
    %633 = vmatpush.msra.mxu0 %v575
    %634 = vmatmul.f32.gmra.mxu0 %v613
    %v635 = vpop.f32.mrf.mxu0
    %v636 = vadd.f32 %v607, %v635
    %637 = vmatmul.f32.gmra.mxu0 %v616
    %v638 = vpop.f32.mrf.mxu0
    %v639 = vadd.f32 %v610, %v638
    %640 = vdwg.mxu0
    %v641 = vadd.f32 %v636, %v570
    %v642 = vadd.f32 %v639, %v573
    %643 = vst.msk [vmem:[%s18] sm:$0xff] %vm351, %v641
    %vm644 = vcmask 259072
    %645 = vst.msk [vmem:[%s18 + $0x8] sm:$0x3f] %vm644, %v642
    // Predicated region
    $region106: #{lpkt_forward.1} parent=1 // pred_check
      _
    $region107: #{lpkt_forward.1} parent=1 // pred_check_branch
      %647 = sbr.rel (0) target = $region109
    $region108: #{lpkt_forward.1} parent=1 // pred_region
      _
    $region109: #{lpkt_forward.1} parent=1 // pred_fallthru
      _
    // Predicated region
    $region110: #{lpkt_forward.1} parent=1 // pred_check
      _
    $region111: #{lpkt_forward.1} parent=1 // pred_check_branch
      %649 = sbr.rel (0) target = $region113
    $region112: #{lpkt_forward.1} parent=1 // pred_region
      _
    $region113: #{lpkt_forward.1} parent=1 // pred_fallthru
      _
    %650 = vsyncpa [#allocation3], 1
    %651 = vsyncpa [#allocation5], 1
    %652 = vsyncpa [#allocation8], 1
    %653 = vsyncpa [#allocation11], 1
    %654 = vsyncpa [#allocation14], 1

</llo_original>
